<compile_context>
chip_gen: v7x
topology: tpu7x:2x2x1
jax: 0.10.0
libtpu: 0.0.40
codegen_flags: <defaults>
</compile_context>

<pallas_src>
import jax
import jax.numpy as jnp
from jax import lax
from jax.experimental import pallas as pl
from jax.experimental.pallas import tpu as pltpu

_OUT_LANES = 8   # packed output slab: lane0=action, lane1=log_prob, lane2=value


def _round_up(x, m):
    return ((x + m - 1) // m) * m


def _ac_kernel(x_ref, g_ref, w1_ref, b1_ref, wh_ref, bh_ref, out_ref):
    n_act = wh_ref.shape[1] - 1                         # static: wh is [H, A+1]

    x = x_ref[...]                                                     # [TB, D]

    # shared trunk: Linear + ReLU
    h = jnp.dot(x, w1_ref[...], preferred_element_type=jnp.float32,
                precision=lax.Precision.HIGHEST) + b1_ref[...]
    h = jnp.maximum(h, 0.0)                                            # [TB, H]

    # fused heads: one matmul produces [logits | value]
    head = jnp.dot(h, wh_ref[...], preferred_element_type=jnp.float32,
                   precision=lax.Precision.HIGHEST) + bh_ref[...]
    logits = head[:, :n_act]                                           # [TB, A]
    value = head[:, n_act:n_act + 1]                                   # [TB, 1]

    # log-softmax (Categorical(logits=...) normalization)
    m = jnp.max(logits, axis=-1, keepdims=True)
    z = logits - m
    lse = jnp.log(jnp.sum(jnp.exp(z), axis=-1, keepdims=True))
    logp_all = z - lse                                                 # [TB, A]

    # categorical sample via Gumbel-max: argmax(logits + g), ties -> lowest idx
    # (NaN logits would yield index == n_act; benign for healthy inputs)
    pert = logits + g_ref[...]                                         # [TB, A]
    pmax = jnp.max(pert, axis=-1, keepdims=True)
    iota = lax.broadcasted_iota(jnp.int32, logits.shape, 1)
    action = jnp.min(jnp.where(pert >= pmax, iota, n_act),
                     axis=-1, keepdims=True)                           # [TB, 1]

    # log_prob of the sampled action (one-hot gather)
    logp = jnp.sum(jnp.where(iota == action, logp_all, 0.0),
                   axis=-1, keepdims=True)                             # [TB, 1]

    # pack into one small slab: lane0=action, lane1=log_prob, lane2=value
    lane = lax.broadcasted_iota(jnp.int32, out_ref.shape, 1)
    out_ref[...] = jnp.where(lane == 0, action.astype(jnp.float32),
                             jnp.where(lane == 1, logp,
                                       jnp.where(lane == 2, value, 0.0)))


def pack_params(w1, b1, wp, bp, wv, bv):
    """Fuse the value head into the policy head (do once, not per forward)."""
    w_head = jnp.concatenate([wp, wv], axis=1)      # [H, A + 1]
    b_head = jnp.concatenate([bp, bv], axis=1)      # [1, A + 1]
    return (w1, b1, w_head, b_head)


def multi_ac_forward(state, packed_params, key, *, tile_rows=1024):
    """MultiAC.forward: returns (action [B] i32, log_prob [B] f32, value [B,1] f32)."""
    w1, b1, w_head, b_head = packed_params
    B, D = state.shape
    H = w1.shape[1]
    A1 = w_head.shape[1]                            # A + 1
    A = A1 - 1
    assert A < (1 << 24), "action index round-trips through f32"

    # Batch tiling.  For non-trivial batches always produce >= 2 grid steps so
    # the "parallel" batch axis can shard across both TensorCores on v7x.
    if B <= 16:
        TB = B
    else:
        TB = min(tile_rows, _round_up(pl.cdiv(B, 2), 8))
    Bp = _round_up(B, TB)
    if Bp != B:
        state = jnp.pad(state, ((0, Bp - B), (0, 0)))
    grid = (Bp // TB,)

    # Gumbel(0,1) noise generated outside the kernel (portable + reproducible;
    # the hardware PRNG does not lower on the interpret/CPU fallback).
    gumbel = jax.random.gumbel(key, (Bp, A), dtype=jnp.float32)

    out_bytes = Bp * _OUT_LANES * 4
    in_bytes = (state.size + gumbel.size + w1.size + b1.size
                + w_head.size + b_head.size) * 4
    cost = pl.CostEstimate(
        flops=2 * Bp * (D * H + H * A1),
        transcendentals=3 * Bp * A,                 # exp + log in softmax / gather
        bytes_accessed=in_bytes + out_bytes,
    )

    out = pl.pallas_call(
        _ac_kernel,
        out_shape=jax.ShapeDtypeStruct((Bp, _OUT_LANES), jnp.float32),
        grid_spec=pltpu.PrefetchScalarGridSpec(
            num_scalar_prefetch=0,
            grid=grid,
            in_specs=[
                pl.BlockSpec((TB, D), lambda i: (i, 0)),     # state: streamed per tile
                pl.BlockSpec((TB, A), lambda i: (i, 0)),     # gumbel noise per tile
                pl.BlockSpec((D, H), lambda i: (0, 0)),      # weights: VMEM-resident
                pl.BlockSpec((1, H), lambda i: (0, 0)),
                pl.BlockSpec((H, A1), lambda i: (0, 0)),
                pl.BlockSpec((1, A1), lambda i: (0, 0)),
            ],
            out_specs=pl.BlockSpec((TB, _OUT_LANES), lambda i: (i, 0)),
        ),
        compiler_params=pltpu.CompilerParams(
            dimension_semantics=("parallel",)),      # shard batch tiles over TCs (v7x)
        cost_estimate=cost,
    )(state, gumbel, w1, b1, w_head, b_head)

    out = out[:B]
    action = out[:, 0].astype(jnp.int32)
    log_prob = out[:, 1]
    value = out[:, 2:3]
    return action, log_prob, value


def init_params(key, in_dim, hidden, n_actions):
    k1, k2, k3 = jax.random.split(key, 3)
    s1 = 1.0 / jnp.sqrt(jnp.float32(in_dim))
    s2 = 1.0 / jnp.sqrt(jnp.float32(hidden))
    w1 = jax.random.normal(k1, (in_dim, hidden), jnp.float32) * s1
    b1 = jnp.zeros((1, hidden), jnp.float32)
    wp = jax.random.normal(k2, (hidden, n_actions), jnp.float32) * s2
    bp = jnp.zeros((1, n_actions), jnp.float32)
    wv = jax.random.normal(k3, (hidden, 1), jnp.float32) * s2
    bv = jnp.zeros((1, 1), jnp.float32)
    return (w1, b1, wp, bp, wv, bv)


def _check(state, params, packed, key, n_actions):
    B = state.shape[0]
    action, log_prob, value = multi_ac_forward(state, packed, key)
    jax.block_until_ready((action, log_prob, value))

    assert action.shape == (B,) and action.dtype == jnp.int32
    assert log_prob.shape == (B,) and log_prob.dtype == jnp.float32
    assert value.shape == (B, 1) and value.dtype == jnp.float32
    assert bool(jnp.all((action >= 0) & (action < n_actions)))
    assert bool(jnp.all(log_prob <= 0.0))

    # pure-JAX reference for the deterministic outputs
    w1, b1, wp, bp, wv, bv = params
    h_ref = jnp.maximum(state @ w1 + b1, 0.0)
    logits_ref = h_ref @ wp + bp
    value_ref = h_ref @ wv + bv
    logp_all_ref = jax.nn.log_softmax(logits_ref, axis=-1)
    assert bool(jnp.allclose(value, value_ref, atol=1e-4, rtol=1e-4))
    assert bool(jnp.allclose(log_prob, logp_all_ref[jnp.arange(B), action],
                             atol=1e-4, rtol=1e-4))


if __name__ == "__main__":
    key = jax.random.PRNGKey(0)
    k_param, k_state, k_state2, k_samp1, k_samp2 = jax.random.split(key, 5)

    B, D, H, A = 2, 16, 32, 8          # batch, obs-features, hidden, actions
    params = init_params(k_param, D, H, A)
    packed = pack_params(*params)

    # small batch: single-tile path
    state = jax.random.normal(k_state, (B, D), jnp.float32)
    _check(state, params, packed, k_samp1, n_actions=A)

    # larger (padded, multi-tile) batch: exercises the grid / resident-weight /
    # megacore-split path
    B2 = 1000
    state2 = jax.random.normal(k_state2, (B2, D), jnp.float32)
    _check(state2, params, packed, k_samp2, n_actions=A)

    print("KERNEL_OK")
</pallas_src>

<mosaic_0001>
module attributes {stable_mosaic.version = 11 : i64} {
  func.func @_ac_kernel(%arg0: i32, %arg1: memref<2x16xf32, #tpu.memory_space<vmem>>, %arg2: memref<2x8xf32, #tpu.memory_space<vmem>>, %arg3: memref<16x32xf32, #tpu.memory_space<vmem>>, %arg4: memref<1x32xf32, #tpu.memory_space<vmem>>, %arg5: memref<32x9xf32, #tpu.memory_space<vmem>>, %arg6: memref<1x9xf32, #tpu.memory_space<vmem>>, %arg7: memref<2x8xf32, #tpu.memory_space<vmem>>) attributes {dimension_semantics = [#tpu.dimension_semantics<parallel>], iteration_bounds = array<i64: 1>, scalar_prefetch = 0 : i64, scratch_operands = 0 : i64, tpu.core_type = #tpu.core_type<tc>, window_params = [{transform_indices = @transform_0, window_bounds = array<i64: 2, 16>}, {transform_indices = @transform_1, window_bounds = array<i64: 2, 8>}, {pipeline_mode = #tpu.pipeline_mode<synchronous>, transform_indices = @transform_2, window_bounds = array<i64: 16, 32>}, {pipeline_mode = #tpu.pipeline_mode<synchronous>, transform_indices = @transform_3, window_bounds = array<i64: 1, 32>}, {pipeline_mode = #tpu.pipeline_mode<synchronous>, transform_indices = @transform_4, window_bounds = array<i64: 32, 9>}, {pipeline_mode = #tpu.pipeline_mode<synchronous>, transform_indices = @transform_5, window_bounds = array<i64: 1, 9>}, {transform_indices = @transform_6, window_bounds = array<i64: 2, 8>}]} {
    %c0 = arith.constant 0 : index
    %c0_0 = arith.constant 0 : index
    %0 = vector.load %arg1[%c0, %c0_0] : memref<2x16xf32, #tpu.memory_space<vmem>>, vector<2x16xf32>
    %c0_1 = arith.constant 0 : index
    %c0_2 = arith.constant 0 : index
    %1 = vector.load %arg3[%c0_1, %c0_2] : memref<16x32xf32, #tpu.memory_space<vmem>>, vector<16x32xf32>
    %cst = arith.constant dense<0.000000e+00> : vector<2x32xf32>
    %2 = tpu.matmul %0, %1, %cst {dimension_numbers = #tpu.dot_dimension_numbers<[1], [0], [0], [1], [0, 0, 1, 1], [], []>, precision = #tpu.contract_precision<fp32>} : vector<2x16xf32>, vector<16x32xf32>, vector<2x32xf32> -> vector<2x32xf32>
    %c0_3 = arith.constant 0 : index
    %c0_4 = arith.constant 0 : index
    %3 = vector.load %arg4[%c0_3, %c0_4] : memref<1x32xf32, #tpu.memory_space<vmem>>, vector<1x32xf32>
    %4 = vector.broadcast %3 : vector<1x32xf32> to vector<2x32xf32>
    %5 = arith.addf %2, %4 : vector<2x32xf32>
    %cst_5 = arith.constant 0.000000e+00 : f32
    %6 = vector.broadcast %cst_5 : f32 to vector<2x32xf32>
    %7 = arith.maximumf %5, %6 : vector<2x32xf32>
    %c0_6 = arith.constant 0 : index
    %c0_7 = arith.constant 0 : index
    %8 = vector.load %arg5[%c0_6, %c0_7] : memref<32x9xf32, #tpu.memory_space<vmem>>, vector<32x9xf32>
    %cst_8 = arith.constant dense<0.000000e+00> : vector<2x9xf32>
    %9 = tpu.matmul %7, %8, %cst_8 {dimension_numbers = #tpu.dot_dimension_numbers<[1], [0], [0], [1], [0, 0, 1, 1], [], []>, precision = #tpu.contract_precision<fp32>} : vector<2x32xf32>, vector<32x9xf32>, vector<2x9xf32> -> vector<2x9xf32>
    %c0_9 = arith.constant 0 : index
    %c0_10 = arith.constant 0 : index
    %10 = vector.load %arg6[%c0_9, %c0_10] : memref<1x9xf32, #tpu.memory_space<vmem>>, vector<1x9xf32>
    %11 = vector.broadcast %10 : vector<1x9xf32> to vector<2x9xf32>
    %12 = arith.addf %9, %11 : vector<2x9xf32>
    %13 = vector.extract_strided_slice %12 {offsets = [0, 0], sizes = [2, 8], strides = [1, 1]} : vector<2x9xf32> to vector<2x8xf32>
    %14 = vector.extract_strided_slice %12 {offsets = [0, 8], sizes = [2, 1], strides = [1, 1]} : vector<2x9xf32> to vector<2x1xf32>
    %cst_11 = arith.constant dense<0xFF800000> : vector<2xf32>
    %15 = vector.multi_reduction <maximumf>, %13, %cst_11 [1] : vector<2x8xf32> to vector<2xf32>
    %16 = vector.shape_cast %15 : vector<2xf32> to vector<2x1xf32>
    %17 = vector.broadcast %16 : vector<2x1xf32> to vector<2x8xf32>
    %18 = arith.subf %13, %17 : vector<2x8xf32>
    %19 = math.exp %18 : vector<2x8xf32>
    %cst_12 = arith.constant dense<0.000000e+00> : vector<2xf32>
    %20 = vector.multi_reduction <add>, %19, %cst_12 [1] : vector<2x8xf32> to vector<2xf32>
    %21 = vector.shape_cast %20 : vector<2xf32> to vector<2x1xf32>
    %22 = math.log %21 : vector<2x1xf32>
    %23 = vector.broadcast %22 : vector<2x1xf32> to vector<2x8xf32>
    %24 = arith.subf %18, %23 : vector<2x8xf32>
    %c0_13 = arith.constant 0 : index
    %c0_14 = arith.constant 0 : index
    %25 = vector.load %arg2[%c0_13, %c0_14] : memref<2x8xf32, #tpu.memory_space<vmem>>, vector<2x8xf32>
    %26 = arith.addf %13, %25 : vector<2x8xf32>
    %cst_15 = arith.constant dense<0xFF800000> : vector<2xf32>
    %27 = vector.multi_reduction <maximumf>, %26, %cst_15 [1] : vector<2x8xf32> to vector<2xf32>
    %28 = vector.shape_cast %27 : vector<2xf32> to vector<2x1xf32>
    %29 = tpu.iota {dimensions = array<i32: 1>} : vector<2x8xi32>
    %30 = vector.broadcast %28 : vector<2x1xf32> to vector<2x8xf32>
    %31 = arith.cmpf oge, %26, %30 : vector<2x8xf32>
    %c8_i32 = arith.constant 8 : i32
    %32 = vector.broadcast %c8_i32 : i32 to vector<2x8xi32>
    %33 = arith.select %31, %29, %32 : vector<2x8xi1>, vector<2x8xi32>
    %cst_16 = arith.constant dense<2147483647> : vector<2xi32>
    %34 = vector.multi_reduction <minsi>, %33, %cst_16 [1] : vector<2x8xi32> to vector<2xi32>
    %35 = vector.shape_cast %34 : vector<2xi32> to vector<2x1xi32>
    %36 = vector.broadcast %35 : vector<2x1xi32> to vector<2x8xi32>
    %37 = arith.cmpi eq, %29, %36 : vector<2x8xi32>
    %cst_17 = arith.constant 0.000000e+00 : f32
    %38 = vector.broadcast %cst_17 : f32 to vector<2x8xf32>
    %39 = arith.select %37, %24, %38 : vector<2x8xi1>, vector<2x8xf32>
    %cst_18 = arith.constant dense<0.000000e+00> : vector<2xf32>
    %40 = vector.multi_reduction <add>, %39, %cst_18 [1] : vector<2x8xf32> to vector<2xf32>
    %41 = vector.shape_cast %40 : vector<2xf32> to vector<2x1xf32>
    %42 = tpu.iota {dimensions = array<i32: 1>} : vector<2x8xi32>
    %c0_i32 = arith.constant 0 : i32
    %43 = vector.broadcast %c0_i32 : i32 to vector<2x8xi32>
    %44 = arith.cmpi eq, %42, %43 : vector<2x8xi32>
    %45 = arith.sitofp %35 : vector<2x1xi32> to vector<2x1xf32>
    %c1_i32 = arith.constant 1 : i32
    %46 = vector.broadcast %c1_i32 : i32 to vector<2x8xi32>
    %47 = arith.cmpi eq, %42, %46 : vector<2x8xi32>
    %c2_i32 = arith.constant 2 : i32
    %48 = vector.broadcast %c2_i32 : i32 to vector<2x8xi32>
    %49 = arith.cmpi eq, %42, %48 : vector<2x8xi32>
    %cst_19 = arith.constant 0.000000e+00 : f32
    %50 = vector.shape_cast %14 : vector<2x1xf32> to vector<2x1xf32>
    %51 = vector.broadcast %50 : vector<2x1xf32> to vector<2x8xf32>
    %52 = vector.broadcast %cst_19 : f32 to vector<2x8xf32>
    %53 = arith.select %49, %51, %52 : vector<2x8xi1>, vector<2x8xf32>
    %54 = vector.shape_cast %41 : vector<2x1xf32> to vector<2x1xf32>
    %55 = vector.broadcast %54 : vector<2x1xf32> to vector<2x8xf32>
    %56 = arith.select %47, %55, %53 : vector<2x8xi1>, vector<2x8xf32>
    %57 = vector.shape_cast %45 : vector<2x1xf32> to vector<2x1xf32>
    %58 = vector.broadcast %57 : vector<2x1xf32> to vector<2x8xf32>
    %59 = arith.select %44, %58, %56 : vector<2x8xi1>, vector<2x8xf32>
    %c0_20 = arith.constant 0 : index
    %c0_21 = arith.constant 0 : index
    %60 = vector.load %arg7[%c0_20, %c0_21] : memref<2x8xf32, #tpu.memory_space<vmem>>, vector<2x8xf32>
    tpu.vector_store %arg7[%c0_20, %c0_21], %59 {strides = array<i32>} : memref<2x8xf32, #tpu.memory_space<vmem>>, vector<2x8xf32>,
    return
  }
  func.func @transform_0(%arg0: i32) -> (i32, i32) {
    %c0_i32 = arith.constant 0 : i32
    %c0_i32_0 = arith.constant 0 : i32
    return %arg0, %c0_i32 : i32, i32
  }
  func.func @transform_1(%arg0: i32) -> (i32, i32) {
    %c0_i32 = arith.constant 0 : i32
    %c0_i32_0 = arith.constant 0 : i32
    return %arg0, %c0_i32 : i32, i32
  }
  func.func @transform_2(%arg0: i32) -> (i32, i32) {
    %c0_i32 = arith.constant 0 : i32
    %c0_i32_0 = arith.constant 0 : i32
    %c0_i32_1 = arith.constant 0 : i32
    return %c0_i32, %c0_i32_0 : i32, i32
  }
  func.func @transform_3(%arg0: i32) -> (i32, i32) {
    %c0_i32 = arith.constant 0 : i32
    %c0_i32_0 = arith.constant 0 : i32
    %c0_i32_1 = arith.constant 0 : i32
    return %c0_i32, %c0_i32_0 : i32, i32
  }
  func.func @transform_4(%arg0: i32) -> (i32, i32) {
    %c0_i32 = arith.constant 0 : i32
    %c0_i32_0 = arith.constant 0 : i32
    %c0_i32_1 = arith.constant 0 : i32
    return %c0_i32, %c0_i32_0 : i32, i32
  }
  func.func @transform_5(%arg0: i32) -> (i32, i32) {
    %c0_i32 = arith.constant 0 : i32
    %c0_i32_0 = arith.constant 0 : i32
    %c0_i32_1 = arith.constant 0 : i32
    return %c0_i32, %c0_i32_0 : i32, i32
  }
  func.func @transform_6(%arg0: i32) -> (i32, i32) {
    %c0_i32 = arith.constant 0 : i32
    %c0_i32_0 = arith.constant 0 : i32
    return %arg0, %c0_i32 : i32, i32
  }
}

</mosaic_0001>

<llo_original>
// kernel: tpu_custom_call.1
$region0: #{tpu_custom_call.1}
  #allocation0 [shape = 'u32[]', space=smem, size = 0x4, offset = 0x4, fixed_abs, tag = 'smem constant byte address 0x4 - core index']
  #allocation1 [shape = 'u32[144,128]{1,0:T(1,128)}', space=vmem, size = 0x12000, scoped, tag = 'internal scratch']
  %s0 = inlined_call_operand.vmem [shape: f32[2,16], index: 0, kind: input, shape index: {}]
  %s1 = inlined_call_operand.vmem [shape: f32[2,8], index: 1, kind: input, shape index: {}]
  %s2 = inlined_call_operand.vmem [shape: f32[16,32], index: 2, kind: input, shape index: {}]
  %s3 = inlined_call_operand.vmem [shape: f32[1,32], index: 3, kind: input, shape index: {}]
  %s4 = inlined_call_operand.vmem [shape: f32[32,9], index: 4, kind: input, shape index: {}]
  %s5 = inlined_call_operand.vmem [shape: f32[1,9], index: 5, kind: input, shape index: {}]
  %s6 = inlined_call_operand.hbm [shape: f32[2,8], index: 6, kind: output, shape index: {}]
  %s7 = sld [smem:[#allocation0]]
  $region34: #{tpu_custom_call.1} parent=0
    _
  %s9 = ssub.s32 1, %s7
  %s10 = scalar_select 0, %s9, %s7
  $region1: #{tpu_custom_call.1} parent=0
    #allocation2 [shape = 'u8[1024]{0}', space=vmem, size = 0x400, scoped, tag = 'output window, operand 0, single buffered']
    #allocation3 [shape = 's32[1]{0}', space=sflag, size = 0x4, scoped, tag = 'scoped memory for tpu_custom_call.1']
    %11 = vsyncpa [#allocation3], 0
    // Predicated region
    $region2: #{tpu_custom_call.1} parent=1 // pred_check
      _
    $region3: #{tpu_custom_call.1} parent=1 // pred_check_branch
      %13 = sbr.rel (0) target = $region5
    $region4: #{tpu_custom_call.1} parent=1 // pred_region
      _
    $region5: #{tpu_custom_call.1} parent=1 // pred_fallthru
      _
    // Predicated region
    $region6: #{tpu_custom_call.1} parent=1 // pred_check
      _
    $region7: #{tpu_custom_call.1} parent=1 // pred_check_branch
      %15 = sbr.rel (0) target = $region9
    $region8: #{tpu_custom_call.1} parent=1 // pred_region
      _
    $region9: #{tpu_custom_call.1} parent=1 // pred_fallthru
      _
    // Predicated region
    $region10: #{tpu_custom_call.1} parent=1 // pred_check
      _
    $region11: #{tpu_custom_call.1} parent=1 // pred_check_branch
      %17 = sbr.rel (0) target = $region13
    $region12: #{tpu_custom_call.1} parent=1 // pred_region
      _
    $region13: #{tpu_custom_call.1} parent=1 // pred_fallthru
      _
    // Predicated region
    $region14: #{tpu_custom_call.1} parent=1 // pred_check
      _
    $region15: #{tpu_custom_call.1} parent=1 // pred_check_branch
      %19 = sbr.rel (0) target = $region17
    $region16: #{tpu_custom_call.1} parent=1 // pred_region
      _
    $region17: #{tpu_custom_call.1} parent=1 // pred_fallthru
      _
    // Predicated region
    $region18: #{tpu_custom_call.1} parent=1 // pred_check
      _
    $region19: #{tpu_custom_call.1} parent=1 // pred_check_branch
      %21 = sbr.rel (0) target = $region21
    $region20: #{tpu_custom_call.1} parent=1 // pred_region
      _
    $region21: #{tpu_custom_call.1} parent=1 // pred_fallthru
      _
    // Predicated region
    $region22: #{tpu_custom_call.1} parent=1 // pred_check
      _
    $region23: #{tpu_custom_call.1} parent=1 // pred_check_branch
      %23 = sbr.rel (0) target = $region25
    $region24: #{tpu_custom_call.1} parent=1 // pred_region
      _
    $region25: #{tpu_custom_call.1} parent=1 // pred_fallthru
      _
    %v24 = vld [vmem:[%s0] sm:$0x3]
    %v25 = vld [vmem:[%s2] sm:$0xff]
    %v26 = vld [vmem:[%s2 + $0x8] sm:$0xff]
    %v27 = vld [vmem:[%s3] sm:$0x1]
    %v29 = vlaneseq
    %v30 = vshrl.u32 %v29, 7
    %v31 = vsub.s32 0, %v30
    %v32 = vrot.slane %v27, %v31
    %vm34 = vcmask 130048
    %v36 = vsel %vm34, %v24, 0
    %38 = vmatprep.subr.mxu0 0.0
    %v39 = vand.u32 %v25, 4294901760
    %40 = vmatpush1.msra.mxu0 %v39
    %41 = vmatprep.subr.mxu0 0.0
    %v42 = vand.u32 %v26, 4294901760
    %43 = vmatpush1.msra.mxu0 %v42
    %44 = vmatprep.subr.mxu0 0.0
    %45 = vmatpush1.msra.mxu0 0.0
    %46 = vmatprep.subr.mxu0 0.0
    %47 = vmatpush1.msra.mxu0 0.0
    %48 = vmatprep.subr.mxu0 0.0
    %49 = vmatpush1.msra.mxu0 0.0
    %50 = vmatprep.subr.mxu0 0.0
    %51 = vmatpush1.msra.mxu0 0.0
    %52 = vmatprep.subr.mxu0 0.0
    %53 = vmatpush1.msra.mxu0 0.0
    %54 = vmatprep.subr.mxu0 0.0
    %55 = vmatpush1.msra.mxu0 0.0
    %56 = vmatprep.subr.mxu0 0.0
    %57 = vmatpush1.msra.mxu0 0.0
    %58 = vmatprep.subr.mxu0 0.0
    %59 = vmatpush1.msra.mxu0 0.0
    %60 = vmatprep.subr.mxu0 0.0
    %61 = vmatpush1.msra.mxu0 0.0
    %62 = vmatprep.subr.mxu0 0.0
    %63 = vmatpush1.msra.mxu0 0.0
    %64 = vmatprep.subr.mxu0 0.0
    %65 = vmatpush1.msra.mxu0 0.0
    %66 = vmatprep.subr.mxu0 0.0
    %67 = vmatpush1.msra.mxu0 0.0
    %68 = vmatprep.subr.mxu0 0.0
    %69 = vmatpush1.msra.mxu0 0.0
    %70 = vmatprep.subr.mxu0 0.0
    %71 = vmatpush1.msra.mxu0 0.0
    %72 = vmatprep.subr.mxu0 0.0
    %73 = vmatpush1.msra.mxu0 0.0
    %74 = vmatprep.subr.mxu0 0.0
    %75 = vmatpush1.msra.mxu0 0.0
    %76 = vmatprep.subr.mxu0 0.0
    %77 = vmatpush1.msra.mxu0 0.0
    %78 = vmatprep.subr.mxu0 0.0
    %79 = vmatpush1.msra.mxu0 0.0
    %80 = vmatprep.subr.mxu0 0.0
    %81 = vmatpush1.msra.mxu0 0.0
    %82 = vmatprep.subr.mxu0 0.0
    %83 = vmatpush1.msra.mxu0 0.0
    %84 = vmatprep.subr.mxu0 0.0
    %85 = vmatpush1.msra.mxu0 0.0
    %86 = vmatprep.subr.mxu0 0.0
    %87 = vmatpush1.msra.mxu0 0.0
    %88 = vmatprep.subr.mxu0 0.0
    %89 = vmatpush1.msra.mxu0 0.0
    %90 = vmatprep.subr.mxu0 0.0
    %91 = vmatpush1.msra.mxu0 0.0
    %92 = vmatprep.subr.mxu0 0.0
    %93 = vmatpush1.msra.mxu0 0.0
    %94 = vmatprep.subr.mxu0 0.0
    %95 = vmatpush1.msra.mxu0 0.0
    %96 = vmatprep.subr.mxu0 0.0
    %97 = vmatpush1.msra.mxu0 0.0
    %98 = vmatprep.subr.mxu0 0.0
    %99 = vmatpush1.msra.mxu0 0.0
    %100 = vmatprep.subr.mxu0 0.0
    %101 = vmatpush1.msra.mxu0 0.0
    %102 = vmatprep.subr.mxu0 0.0
    %103 = vmatpush1.msra.mxu0 0.0
    %104 = vmatprep.mubr.f32.mxu0 0.0
    %v105 = vand.u32 %v36, 4294901760
    %v106 = vsub.f32 %v36, %v105
    %v107 = vand.u32 %v106, 4294901760
    %v108 = vsub.f32 %v106, %v107
    %v109 = vand.u32 %v108, 4294901760
    %110 = vmatmul.mubr.f32.gmra.mrb[0].mxu0 %v109
    %v111 = vpop.f32.mrb[0].mxu0
    %v112 = vadd.f32 %v32, %v111
    %v113 = vpop.f32.mrb[0].mxu0
    %114 = vdwg.mxu0
    %115 = vmatprep.subr.mxu0 0.0
    %v116 = vand.u32 %v25, 4294901760
    %v117 = vsub.f32 %v25, %v116
    %v118 = vand.u32 %v117, 4294901760
    %v119 = vsub.f32 %v117, %v118
    %v120 = vand.u32 %v119, 4294901760
    %121 = vmatpush1.msra.mxu0 %v120
    %122 = vmatprep.subr.mxu0 0.0
    %v123 = vand.u32 %v26, 4294901760
    %v124 = vsub.f32 %v26, %v123
    %v125 = vand.u32 %v124, 4294901760
    %v126 = vsub.f32 %v124, %v125
    %v127 = vand.u32 %v126, 4294901760
    %128 = vmatpush1.msra.mxu0 %v127
    %129 = vmatprep.subr.mxu0 0.0
    %130 = vmatpush1.msra.mxu0 0.0
    %131 = vmatprep.subr.mxu0 0.0
    %132 = vmatpush1.msra.mxu0 0.0
    %133 = vmatprep.subr.mxu0 0.0
    %134 = vmatpush1.msra.mxu0 0.0
    %135 = vmatprep.subr.mxu0 0.0
    %136 = vmatpush1.msra.mxu0 0.0
    %137 = vmatprep.subr.mxu0 0.0
    %138 = vmatpush1.msra.mxu0 0.0
    %139 = vmatprep.subr.mxu0 0.0
    %140 = vmatpush1.msra.mxu0 0.0
    %141 = vmatprep.subr.mxu0 0.0
    %142 = vmatpush1.msra.mxu0 0.0
    %143 = vmatprep.subr.mxu0 0.0
    %144 = vmatpush1.msra.mxu0 0.0
    %145 = vmatprep.subr.mxu0 0.0
    %146 = vmatpush1.msra.mxu0 0.0
    %147 = vmatprep.subr.mxu0 0.0
    %148 = vmatpush1.msra.mxu0 0.0
    %149 = vmatprep.subr.mxu0 0.0
    %150 = vmatpush1.msra.mxu0 0.0
    %151 = vmatprep.subr.mxu0 0.0
    %152 = vmatpush1.msra.mxu0 0.0
    %153 = vmatprep.subr.mxu0 0.0
    %154 = vmatpush1.msra.mxu0 0.0
    %155 = vmatprep.subr.mxu0 0.0
    %156 = vmatpush1.msra.mxu0 0.0
    %157 = vmatprep.subr.mxu0 0.0
    %158 = vmatpush1.msra.mxu0 0.0
    %159 = vmatprep.subr.mxu0 0.0
    %160 = vmatpush1.msra.mxu0 0.0
    %161 = vmatprep.subr.mxu0 0.0
    %162 = vmatpush1.msra.mxu0 0.0
    %163 = vmatprep.subr.mxu0 0.0
    %164 = vmatpush1.msra.mxu0 0.0
    %165 = vmatprep.subr.mxu0 0.0
    %166 = vmatpush1.msra.mxu0 0.0
    %167 = vmatprep.subr.mxu0 0.0
    %168 = vmatpush1.msra.mxu0 0.0
    %169 = vmatprep.subr.mxu0 0.0
    %170 = vmatpush1.msra.mxu0 0.0
    %171 = vmatprep.subr.mxu0 0.0
    %172 = vmatpush1.msra.mxu0 0.0
    %173 = vmatprep.subr.mxu0 0.0
    %174 = vmatpush1.msra.mxu0 0.0
    %175 = vmatprep.subr.mxu0 0.0
    %176 = vmatpush1.msra.mxu0 0.0
    %177 = vmatprep.subr.mxu0 0.0
    %178 = vmatpush1.msra.mxu0 0.0
    %179 = vmatprep.subr.mxu0 0.0
    %180 = vmatpush1.msra.mxu0 0.0
    %181 = vmatprep.subr.mxu0 0.0
    %182 = vmatpush1.msra.mxu0 0.0
    %183 = vmatprep.subr.mxu0 0.0
    %184 = vmatpush1.msra.mxu0 0.0
    %185 = vmatprep.subr.mxu0 0.0
    %186 = vmatpush1.msra.mxu0 0.0
    %187 = vmatprep.subr.mxu0 0.0
    %188 = vmatpush1.msra.mxu0 0.0
    %189 = vmatprep.mubr.f32.mxu0 0.0
    %v190 = vand.u32 %v36, 4294901760
    %191 = vmatmul.mubr.f32.gmra.mrb[0].mxu0 %v190
    %v192 = vpop.f32.mrb[0].mxu0
    %v193 = vadd.f32 %v112, %v192
    %v194 = vpop.f32.mrb[0].mxu0
    %195 = vdwg.mxu0
    %196 = vmatprep.subr.mxu0 0.0
    %v197 = vand.u32 %v25, 4294901760
    %v198 = vsub.f32 %v25, %v197
    %199 = vmatpush1.msra.mxu0 %v198
    %200 = vmatprep.subr.mxu0 0.0
    %v201 = vand.u32 %v26, 4294901760
    %v202 = vsub.f32 %v26, %v201
    %203 = vmatpush1.msra.mxu0 %v202
    %204 = vmatprep.subr.mxu0 0.0
    %205 = vmatpush1.msra.mxu0 0.0
    %206 = vmatprep.subr.mxu0 0.0
    %207 = vmatpush1.msra.mxu0 0.0
    %208 = vmatprep.subr.mxu0 0.0
    %209 = vmatpush1.msra.mxu0 0.0
    %210 = vmatprep.subr.mxu0 0.0
    %211 = vmatpush1.msra.mxu0 0.0
    %212 = vmatprep.subr.mxu0 0.0
    %213 = vmatpush1.msra.mxu0 0.0
    %214 = vmatprep.subr.mxu0 0.0
    %215 = vmatpush1.msra.mxu0 0.0
    %216 = vmatprep.subr.mxu0 0.0
    %217 = vmatpush1.msra.mxu0 0.0
    %218 = vmatprep.subr.mxu0 0.0
    %219 = vmatpush1.msra.mxu0 0.0
    %220 = vmatprep.subr.mxu0 0.0
    %221 = vmatpush1.msra.mxu0 0.0
    %222 = vmatprep.subr.mxu0 0.0
    %223 = vmatpush1.msra.mxu0 0.0
    %224 = vmatprep.subr.mxu0 0.0
    %225 = vmatpush1.msra.mxu0 0.0
    %226 = vmatprep.subr.mxu0 0.0
    %227 = vmatpush1.msra.mxu0 0.0
    %228 = vmatprep.subr.mxu0 0.0
    %229 = vmatpush1.msra.mxu0 0.0
    %230 = vmatprep.subr.mxu0 0.0
    %231 = vmatpush1.msra.mxu0 0.0
    %232 = vmatprep.subr.mxu0 0.0
    %233 = vmatpush1.msra.mxu0 0.0
    %234 = vmatprep.subr.mxu0 0.0
    %235 = vmatpush1.msra.mxu0 0.0
    %236 = vmatprep.subr.mxu0 0.0
    %237 = vmatpush1.msra.mxu0 0.0
    %238 = vmatprep.subr.mxu0 0.0
    %239 = vmatpush1.msra.mxu0 0.0
    %240 = vmatprep.subr.mxu0 0.0
    %241 = vmatpush1.msra.mxu0 0.0
    %242 = vmatprep.subr.mxu0 0.0
    %243 = vmatpush1.msra.mxu0 0.0
    %244 = vmatprep.subr.mxu0 0.0
    %245 = vmatpush1.msra.mxu0 0.0
    %246 = vmatprep.subr.mxu0 0.0
    %247 = vmatpush1.msra.mxu0 0.0
    %248 = vmatprep.subr.mxu0 0.0
    %249 = vmatpush1.msra.mxu0 0.0
    %250 = vmatprep.subr.mxu0 0.0
    %251 = vmatpush1.msra.mxu0 0.0
    %252 = vmatprep.subr.mxu0 0.0
    %253 = vmatpush1.msra.mxu0 0.0
    %254 = vmatprep.subr.mxu0 0.0
    %255 = vmatpush1.msra.mxu0 0.0
    %256 = vmatprep.subr.mxu0 0.0
    %257 = vmatpush1.msra.mxu0 0.0
    %258 = vmatprep.subr.mxu0 0.0
    %259 = vmatpush1.msra.mxu0 0.0
    %260 = vmatprep.subr.mxu0 0.0
    %261 = vmatpush1.msra.mxu0 0.0
    %262 = vmatprep.subr.mxu0 0.0
    %263 = vmatpush1.msra.mxu0 0.0
    %264 = vmatprep.mubr.f32.mxu0 0.0
    %v265 = vand.u32 %v36, 4294901760
    %v266 = vsub.f32 %v36, %v265
    %267 = vmatmul.mubr.f32.gmra.mrb[0].mxu0 %v266
    %v268 = vpop.f32.mrb[0].mxu0
    %v269 = vadd.f32 %v193, %v268
    %v270 = vpop.f32.mrb[0].mxu0
    %271 = vdwg.mxu0
    %272 = vmatprep.subr.mxu0 0.0
    %v273 = vand.u32 %v25, 4294901760
    %274 = vmatpush1.msra.mxu0 %v273
    %275 = vmatprep.subr.mxu0 0.0
    %v276 = vand.u32 %v26, 4294901760
    %277 = vmatpush1.msra.mxu0 %v276
    %278 = vmatprep.subr.mxu0 0.0
    %279 = vmatpush1.msra.mxu0 0.0
    %280 = vmatprep.subr.mxu0 0.0
    %281 = vmatpush1.msra.mxu0 0.0
    %282 = vmatprep.subr.mxu0 0.0
    %283 = vmatpush1.msra.mxu0 0.0
    %284 = vmatprep.subr.mxu0 0.0
    %285 = vmatpush1.msra.mxu0 0.0
    %286 = vmatprep.subr.mxu0 0.0
    %287 = vmatpush1.msra.mxu0 0.0
    %288 = vmatprep.subr.mxu0 0.0
    %289 = vmatpush1.msra.mxu0 0.0
    %290 = vmatprep.subr.mxu0 0.0
    %291 = vmatpush1.msra.mxu0 0.0
    %292 = vmatprep.subr.mxu0 0.0
    %293 = vmatpush1.msra.mxu0 0.0
    %294 = vmatprep.subr.mxu0 0.0
    %295 = vmatpush1.msra.mxu0 0.0
    %296 = vmatprep.subr.mxu0 0.0
    %297 = vmatpush1.msra.mxu0 0.0
    %298 = vmatprep.subr.mxu0 0.0
    %299 = vmatpush1.msra.mxu0 0.0
    %300 = vmatprep.subr.mxu0 0.0
    %301 = vmatpush1.msra.mxu0 0.0
    %302 = vmatprep.subr.mxu0 0.0
    %303 = vmatpush1.msra.mxu0 0.0
    %304 = vmatprep.subr.mxu0 0.0
    %305 = vmatpush1.msra.mxu0 0.0
    %306 = vmatprep.subr.mxu0 0.0
    %307 = vmatpush1.msra.mxu0 0.0
    %308 = vmatprep.subr.mxu0 0.0
    %309 = vmatpush1.msra.mxu0 0.0
    %310 = vmatprep.subr.mxu0 0.0
    %311 = vmatpush1.msra.mxu0 0.0
    %312 = vmatprep.subr.mxu0 0.0
    %313 = vmatpush1.msra.mxu0 0.0
    %314 = vmatprep.subr.mxu0 0.0
    %315 = vmatpush1.msra.mxu0 0.0
    %316 = vmatprep.subr.mxu0 0.0
    %317 = vmatpush1.msra.mxu0 0.0
    %318 = vmatprep.subr.mxu0 0.0
    %319 = vmatpush1.msra.mxu0 0.0
    %320 = vmatprep.subr.mxu0 0.0
    %321 = vmatpush1.msra.mxu0 0.0
    %322 = vmatprep.subr.mxu0 0.0
    %323 = vmatpush1.msra.mxu0 0.0
    %324 = vmatprep.subr.mxu0 0.0
    %325 = vmatpush1.msra.mxu0 0.0
    %326 = vmatprep.subr.mxu0 0.0
    %327 = vmatpush1.msra.mxu0 0.0
    %328 = vmatprep.subr.mxu0 0.0
    %329 = vmatpush1.msra.mxu0 0.0
    %330 = vmatprep.subr.mxu0 0.0
    %331 = vmatpush1.msra.mxu0 0.0
    %332 = vmatprep.subr.mxu0 0.0
    %333 = vmatpush1.msra.mxu0 0.0
    %334 = vmatprep.subr.mxu0 0.0
    %335 = vmatpush1.msra.mxu0 0.0
    %336 = vmatprep.subr.mxu0 0.0
    %337 = vmatpush1.msra.mxu0 0.0
    %338 = vmatprep.mubr.f32.mxu0 0.0
    %v339 = vand.u32 %v36, 4294901760
    %v340 = vsub.f32 %v36, %v339
    %v341 = vand.u32 %v340, 4294901760
    %342 = vmatmul.mubr.f32.gmra.mrb[0].mxu0 %v341
    %v343 = vpop.f32.mrb[0].mxu0
    %v344 = vadd.f32 %v269, %v343
    %v345 = vpop.f32.mrb[0].mxu0
    %346 = vdwg.mxu0
    %347 = vmatprep.subr.mxu0 0.0
    %v348 = vand.u32 %v25, 4294901760
    %v349 = vsub.f32 %v25, %v348
    %v350 = vand.u32 %v349, 4294901760
    %351 = vmatpush1.msra.mxu0 %v350
    %352 = vmatprep.subr.mxu0 0.0
    %v353 = vand.u32 %v26, 4294901760
    %v354 = vsub.f32 %v26, %v353
    %v355 = vand.u32 %v354, 4294901760
    %356 = vmatpush1.msra.mxu0 %v355
    %357 = vmatprep.subr.mxu0 0.0
    %358 = vmatpush1.msra.mxu0 0.0
    %359 = vmatprep.subr.mxu0 0.0
    %360 = vmatpush1.msra.mxu0 0.0
    %361 = vmatprep.subr.mxu0 0.0
    %362 = vmatpush1.msra.mxu0 0.0
    %363 = vmatprep.subr.mxu0 0.0
    %364 = vmatpush1.msra.mxu0 0.0
    %365 = vmatprep.subr.mxu0 0.0
    %366 = vmatpush1.msra.mxu0 0.0
    %367 = vmatprep.subr.mxu0 0.0
    %368 = vmatpush1.msra.mxu0 0.0
    %369 = vmatprep.subr.mxu0 0.0
    %370 = vmatpush1.msra.mxu0 0.0
    %371 = vmatprep.subr.mxu0 0.0
    %372 = vmatpush1.msra.mxu0 0.0
    %373 = vmatprep.subr.mxu0 0.0
    %374 = vmatpush1.msra.mxu0 0.0
    %375 = vmatprep.subr.mxu0 0.0
    %376 = vmatpush1.msra.mxu0 0.0
    %377 = vmatprep.subr.mxu0 0.0
    %378 = vmatpush1.msra.mxu0 0.0
    %379 = vmatprep.subr.mxu0 0.0
    %380 = vmatpush1.msra.mxu0 0.0
    %381 = vmatprep.subr.mxu0 0.0
    %382 = vmatpush1.msra.mxu0 0.0
    %383 = vmatprep.subr.mxu0 0.0
    %384 = vmatpush1.msra.mxu0 0.0
    %385 = vmatprep.subr.mxu0 0.0
    %386 = vmatpush1.msra.mxu0 0.0
    %387 = vmatprep.subr.mxu0 0.0
    %388 = vmatpush1.msra.mxu0 0.0
    %389 = vmatprep.subr.mxu0 0.0
    %390 = vmatpush1.msra.mxu0 0.0
    %391 = vmatprep.subr.mxu0 0.0
    %392 = vmatpush1.msra.mxu0 0.0
    %393 = vmatprep.subr.mxu0 0.0
    %394 = vmatpush1.msra.mxu0 0.0
    %395 = vmatprep.subr.mxu0 0.0
    %396 = vmatpush1.msra.mxu0 0.0
    %397 = vmatprep.subr.mxu0 0.0
    %398 = vmatpush1.msra.mxu0 0.0
    %399 = vmatprep.subr.mxu0 0.0
    %400 = vmatpush1.msra.mxu0 0.0
    %401 = vmatprep.subr.mxu0 0.0
    %402 = vmatpush1.msra.mxu0 0.0
    %403 = vmatprep.subr.mxu0 0.0
    %404 = vmatpush1.msra.mxu0 0.0
    %405 = vmatprep.subr.mxu0 0.0
    %406 = vmatpush1.msra.mxu0 0.0
    %407 = vmatprep.subr.mxu0 0.0
    %408 = vmatpush1.msra.mxu0 0.0
    %409 = vmatprep.subr.mxu0 0.0
    %410 = vmatpush1.msra.mxu0 0.0
    %411 = vmatprep.subr.mxu0 0.0
    %412 = vmatpush1.msra.mxu0 0.0
    %413 = vmatprep.subr.mxu0 0.0
    %414 = vmatpush1.msra.mxu0 0.0
    %415 = vmatprep.subr.mxu0 0.0
    %416 = vmatpush1.msra.mxu0 0.0
    %417 = vmatprep.mubr.f32.mxu0 0.0
    %v418 = vand.u32 %v36, 4294901760
    %419 = vmatmul.mubr.f32.gmra.mrb[0].mxu0 %v418
    %v420 = vpop.f32.mrb[0].mxu0
    %v421 = vadd.f32 %v344, %v420
    %v422 = vpop.f32.mrb[0].mxu0
    %423 = vdwg.mxu0
    %424 = vmatprep.subr.mxu0 0.0
    %v425 = vand.u32 %v25, 4294901760
    %426 = vmatpush1.msra.mxu0 %v425
    %427 = vmatprep.subr.mxu0 0.0
    %v428 = vand.u32 %v26, 4294901760
    %429 = vmatpush1.msra.mxu0 %v428
    %430 = vmatprep.subr.mxu0 0.0
    %431 = vmatpush1.msra.mxu0 0.0
    %432 = vmatprep.subr.mxu0 0.0
    %433 = vmatpush1.msra.mxu0 0.0
    %434 = vmatprep.subr.mxu0 0.0
    %435 = vmatpush1.msra.mxu0 0.0
    %436 = vmatprep.subr.mxu0 0.0
    %437 = vmatpush1.msra.mxu0 0.0
    %438 = vmatprep.subr.mxu0 0.0
    %439 = vmatpush1.msra.mxu0 0.0
    %440 = vmatprep.subr.mxu0 0.0
    %441 = vmatpush1.msra.mxu0 0.0
    %442 = vmatprep.subr.mxu0 0.0
    %443 = vmatpush1.msra.mxu0 0.0
    %444 = vmatprep.subr.mxu0 0.0
    %445 = vmatpush1.msra.mxu0 0.0
    %446 = vmatprep.subr.mxu0 0.0
    %447 = vmatpush1.msra.mxu0 0.0
    %448 = vmatprep.subr.mxu0 0.0
    %449 = vmatpush1.msra.mxu0 0.0
    %450 = vmatprep.subr.mxu0 0.0
    %451 = vmatpush1.msra.mxu0 0.0
    %452 = vmatprep.subr.mxu0 0.0
    %453 = vmatpush1.msra.mxu0 0.0
    %454 = vmatprep.subr.mxu0 0.0
    %455 = vmatpush1.msra.mxu0 0.0
    %456 = vmatprep.subr.mxu0 0.0
    %457 = vmatpush1.msra.mxu0 0.0
    %458 = vmatprep.subr.mxu0 0.0
    %459 = vmatpush1.msra.mxu0 0.0
    %460 = vmatprep.subr.mxu0 0.0
    %461 = vmatpush1.msra.mxu0 0.0
    %462 = vmatprep.subr.mxu0 0.0
    %463 = vmatpush1.msra.mxu0 0.0
    %464 = vmatprep.subr.mxu0 0.0
    %465 = vmatpush1.msra.mxu0 0.0
    %466 = vmatprep.subr.mxu0 0.0
    %467 = vmatpush1.msra.mxu0 0.0
    %468 = vmatprep.subr.mxu0 0.0
    %469 = vmatpush1.msra.mxu0 0.0
    %470 = vmatprep.subr.mxu0 0.0
    %471 = vmatpush1.msra.mxu0 0.0
    %472 = vmatprep.subr.mxu0 0.0
    %473 = vmatpush1.msra.mxu0 0.0
    %474 = vmatprep.subr.mxu0 0.0
    %475 = vmatpush1.msra.mxu0 0.0
    %476 = vmatprep.subr.mxu0 0.0
    %477 = vmatpush1.msra.mxu0 0.0
    %478 = vmatprep.subr.mxu0 0.0
    %479 = vmatpush1.msra.mxu0 0.0
    %480 = vmatprep.subr.mxu0 0.0
    %481 = vmatpush1.msra.mxu0 0.0
    %482 = vmatprep.subr.mxu0 0.0
    %483 = vmatpush1.msra.mxu0 0.0
    %484 = vmatprep.subr.mxu0 0.0
    %485 = vmatpush1.msra.mxu0 0.0
    %486 = vmatprep.subr.mxu0 0.0
    %487 = vmatpush1.msra.mxu0 0.0
    %488 = vmatprep.subr.mxu0 0.0
    %489 = vmatpush1.msra.mxu0 0.0
    %490 = vmatprep.mubr.f32.mxu0 0.0
    %v491 = vand.u32 %v36, 4294901760
    %492 = vmatmul.mubr.f32.gmra.mrb[0].mxu0 %v491
    %v493 = vpop.f32.mrb[0].mxu0
    %v494 = vadd.f32 %v421, %v493
    %v495 = vpop.f32.mrb[0].mxu0
    %496 = vdwg.mxu0
    %v497 = vmax.f32 %v494, 0.0
    %v498 = vld [vmem:[%s4] sm:$0xff]
    %v499 = vld [vmem:[%s4 + $0x8] sm:$0xff]
    %v500 = vld [vmem:[%s4 + $0x10] sm:$0xff]
    %v501 = vld [vmem:[%s4 + $0x18] sm:$0xff]
    %v502 = vld [vmem:[%s5] sm:$0x1]
    %v504 = vlaneseq
    %v505 = vshrl.u32 %v504, 7
    %v506 = vsub.s32 0, %v505
    %v507 = vrot.slane %v502, %v506
    %vm509 = vcmask 261120
    %v511 = vsel %vm509, %v497, 0
    %513 = vmatprep.subr.mxu0 0.0
    %v514 = vand.u32 %v498, 4294901760
    %515 = vmatpush1.msra.mxu0 %v514
    %516 = vmatprep.subr.mxu0 0.0
    %v517 = vand.u32 %v499, 4294901760
    %518 = vmatpush1.msra.mxu0 %v517
    %519 = vmatprep.subr.mxu0 0.0
    %v520 = vand.u32 %v500, 4294901760
    %521 = vmatpush1.msra.mxu0 %v520
    %522 = vmatprep.subr.mxu0 0.0
    %v523 = vand.u32 %v501, 4294901760
    %524 = vmatpush1.msra.mxu0 %v523
    %525 = vmatprep.subr.mxu0 0.0
    %526 = vmatpush1.msra.mxu0 0.0
    %527 = vmatprep.subr.mxu0 0.0
    %528 = vmatpush1.msra.mxu0 0.0
    %529 = vmatprep.subr.mxu0 0.0
    %530 = vmatpush1.msra.mxu0 0.0
    %531 = vmatprep.subr.mxu0 0.0
    %532 = vmatpush1.msra.mxu0 0.0
    %533 = vmatprep.subr.mxu0 0.0
    %534 = vmatpush1.msra.mxu0 0.0
    %535 = vmatprep.subr.mxu0 0.0
    %536 = vmatpush1.msra.mxu0 0.0
    %537 = vmatprep.subr.mxu0 0.0
    %538 = vmatpush1.msra.mxu0 0.0
    %539 = vmatprep.subr.mxu0 0.0
    %540 = vmatpush1.msra.mxu0 0.0
    %541 = vmatprep.subr.mxu0 0.0
    %542 = vmatpush1.msra.mxu0 0.0
    %543 = vmatprep.subr.mxu0 0.0
    %544 = vmatpush1.msra.mxu0 0.0
    %545 = vmatprep.subr.mxu0 0.0
    %546 = vmatpush1.msra.mxu0 0.0
    %547 = vmatprep.subr.mxu0 0.0
    %548 = vmatpush1.msra.mxu0 0.0
    %549 = vmatprep.subr.mxu0 0.0
    %550 = vmatpush1.msra.mxu0 0.0
    %551 = vmatprep.subr.mxu0 0.0
    %552 = vmatpush1.msra.mxu0 0.0
    %553 = vmatprep.subr.mxu0 0.0
    %554 = vmatpush1.msra.mxu0 0.0
    %555 = vmatprep.subr.mxu0 0.0
    %556 = vmatpush1.msra.mxu0 0.0
    %557 = vmatprep.subr.mxu0 0.0
    %558 = vmatpush1.msra.mxu0 0.0
    %559 = vmatprep.subr.mxu0 0.0
    %560 = vmatpush1.msra.mxu0 0.0
    %561 = vmatprep.subr.mxu0 0.0
    %562 = vmatpush1.msra.mxu0 0.0
    %563 = vmatprep.subr.mxu0 0.0
    %564 = vmatpush1.msra.mxu0 0.0
    %565 = vmatprep.subr.mxu0 0.0
    %566 = vmatpush1.msra.mxu0 0.0
    %567 = vmatprep.subr.mxu0 0.0
    %568 = vmatpush1.msra.mxu0 0.0
    %569 = vmatprep.subr.mxu0 0.0
    %570 = vmatpush1.msra.mxu0 0.0
    %571 = vmatprep.subr.mxu0 0.0
    %572 = vmatpush1.msra.mxu0 0.0
    %573 = vmatprep.subr.mxu0 0.0
    %574 = vmatpush1.msra.mxu0 0.0
    %575 = vmatprep.subr.mxu0 0.0
    %576 = vmatpush1.msra.mxu0 0.0
    %577 = vmatprep.subr.mxu0 0.0
    %578 = vmatpush1.msra.mxu0 0.0
    %579 = vmatprep.subr.mxu0 0.0
    %580 = vmatpush1.msra.mxu0 0.0
    %581 = vmatprep.mubr.f32.mxu0 0.0
    %v582 = vand.u32 %v511, 4294901760
    %v583 = vsub.f32 %v511, %v582
    %v584 = vand.u32 %v583, 4294901760
    %v585 = vsub.f32 %v583, %v584
    %v586 = vand.u32 %v585, 4294901760
    %587 = vmatmul.mubr.f32.gmra.mrb[0].mxu0 %v586
    %v588 = vpop.f32.mrb[0].mxu0
    %v589 = vadd.f32 %v507, %v588
    %v590 = vpop.f32.mrb[0].mxu0
    %591 = vdwg.mxu0
    %592 = vmatprep.subr.mxu0 0.0
    %v593 = vand.u32 %v498, 4294901760
    %v594 = vsub.f32 %v498, %v593
    %v595 = vand.u32 %v594, 4294901760
    %v596 = vsub.f32 %v594, %v595
    %v597 = vand.u32 %v596, 4294901760
    %598 = vmatpush1.msra.mxu0 %v597
    %599 = vmatprep.subr.mxu0 0.0
    %v600 = vand.u32 %v499, 4294901760
    %v601 = vsub.f32 %v499, %v600
    %v602 = vand.u32 %v601, 4294901760
    %v603 = vsub.f32 %v601, %v602
    %v604 = vand.u32 %v603, 4294901760
    %605 = vmatpush1.msra.mxu0 %v604
    %606 = vmatprep.subr.mxu0 0.0
    %v607 = vand.u32 %v500, 4294901760
    %v608 = vsub.f32 %v500, %v607
    %v609 = vand.u32 %v608, 4294901760
    %v610 = vsub.f32 %v608, %v609
    %v611 = vand.u32 %v610, 4294901760
    %612 = vmatpush1.msra.mxu0 %v611
    %613 = vmatprep.subr.mxu0 0.0
    %v614 = vand.u32 %v501, 4294901760
    %v615 = vsub.f32 %v501, %v614
    %v616 = vand.u32 %v615, 4294901760
    %v617 = vsub.f32 %v615, %v616
    %v618 = vand.u32 %v617, 4294901760
    %619 = vmatpush1.msra.mxu0 %v618
    %620 = vmatprep.subr.mxu0 0.0
    %621 = vmatpush1.msra.mxu0 0.0
    %622 = vmatprep.subr.mxu0 0.0
    %623 = vmatpush1.msra.mxu0 0.0
    %624 = vmatprep.subr.mxu0 0.0
    %625 = vmatpush1.msra.mxu0 0.0
    %626 = vmatprep.subr.mxu0 0.0
    %627 = vmatpush1.msra.mxu0 0.0
    %628 = vmatprep.subr.mxu0 0.0
    %629 = vmatpush1.msra.mxu0 0.0
    %630 = vmatprep.subr.mxu0 0.0
    %631 = vmatpush1.msra.mxu0 0.0
    %632 = vmatprep.subr.mxu0 0.0
    %633 = vmatpush1.msra.mxu0 0.0
    %634 = vmatprep.subr.mxu0 0.0
    %635 = vmatpush1.msra.mxu0 0.0
    %636 = vmatprep.subr.mxu0 0.0
    %637 = vmatpush1.msra.mxu0 0.0
    %638 = vmatprep.subr.mxu0 0.0
    %639 = vmatpush1.msra.mxu0 0.0
    %640 = vmatprep.subr.mxu0 0.0
    %641 = vmatpush1.msra.mxu0 0.0
    %642 = vmatprep.subr.mxu0 0.0
    %643 = vmatpush1.msra.mxu0 0.0
    %644 = vmatprep.subr.mxu0 0.0
    %645 = vmatpush1.msra.mxu0 0.0
    %646 = vmatprep.subr.mxu0 0.0
    %647 = vmatpush1.msra.mxu0 0.0
    %648 = vmatprep.subr.mxu0 0.0
    %649 = vmatpush1.msra.mxu0 0.0
    %650 = vmatprep.subr.mxu0 0.0
    %651 = vmatpush1.msra.mxu0 0.0
    %652 = vmatprep.subr.mxu0 0.0
    %653 = vmatpush1.msra.mxu0 0.0
    %654 = vmatprep.subr.mxu0 0.0
    %655 = vmatpush1.msra.mxu0 0.0
    %656 = vmatprep.subr.mxu0 0.0
    %657 = vmatpush1.msra.mxu0 0.0
    %658 = vmatprep.subr.mxu0 0.0
    %659 = vmatpush1.msra.mxu0 0.0
    %660 = vmatprep.subr.mxu0 0.0
    %661 = vmatpush1.msra.mxu0 0.0
    %662 = vmatprep.subr.mxu0 0.0
    %663 = vmatpush1.msra.mxu0 0.0
    %664 = vmatprep.subr.mxu0 0.0
    %665 = vmatpush1.msra.mxu0 0.0
    %666 = vmatprep.subr.mxu0 0.0
    %667 = vmatpush1.msra.mxu0 0.0
    %668 = vmatprep.subr.mxu0 0.0
    %669 = vmatpush1.msra.mxu0 0.0
    %670 = vmatprep.subr.mxu0 0.0
    %671 = vmatpush1.msra.mxu0 0.0
    %672 = vmatprep.subr.mxu0 0.0
    %673 = vmatpush1.msra.mxu0 0.0
    %674 = vmatprep.subr.mxu0 0.0
    %675 = vmatpush1.msra.mxu0 0.0
    %676 = vmatprep.mubr.f32.mxu0 0.0
    %v677 = vand.u32 %v511, 4294901760
    %678 = vmatmul.mubr.f32.gmra.mrb[0].mxu0 %v677
    %v679 = vpop.f32.mrb[0].mxu0
    %v680 = vadd.f32 %v589, %v679
    %v681 = vpop.f32.mrb[0].mxu0
    %682 = vdwg.mxu0
    %683 = vmatprep.subr.mxu0 0.0
    %v684 = vand.u32 %v498, 4294901760
    %v685 = vsub.f32 %v498, %v684
    %686 = vmatpush1.msra.mxu0 %v685
    %687 = vmatprep.subr.mxu0 0.0
    %v688 = vand.u32 %v499, 4294901760
    %v689 = vsub.f32 %v499, %v688
    %690 = vmatpush1.msra.mxu0 %v689
    %691 = vmatprep.subr.mxu0 0.0
    %v692 = vand.u32 %v500, 4294901760
    %v693 = vsub.f32 %v500, %v692
    %694 = vmatpush1.msra.mxu0 %v693
    %695 = vmatprep.subr.mxu0 0.0
    %v696 = vand.u32 %v501, 4294901760
    %v697 = vsub.f32 %v501, %v696
    %698 = vmatpush1.msra.mxu0 %v697
    %699 = vmatprep.subr.mxu0 0.0
    %700 = vmatpush1.msra.mxu0 0.0
    %701 = vmatprep.subr.mxu0 0.0
    %702 = vmatpush1.msra.mxu0 0.0
    %703 = vmatprep.subr.mxu0 0.0
    %704 = vmatpush1.msra.mxu0 0.0
    %705 = vmatprep.subr.mxu0 0.0
    %706 = vmatpush1.msra.mxu0 0.0
    %707 = vmatprep.subr.mxu0 0.0
    %708 = vmatpush1.msra.mxu0 0.0
    %709 = vmatprep.subr.mxu0 0.0
    %710 = vmatpush1.msra.mxu0 0.0
    %711 = vmatprep.subr.mxu0 0.0
    %712 = vmatpush1.msra.mxu0 0.0
    %713 = vmatprep.subr.mxu0 0.0
    %714 = vmatpush1.msra.mxu0 0.0
    %715 = vmatprep.subr.mxu0 0.0
    %716 = vmatpush1.msra.mxu0 0.0
    %717 = vmatprep.subr.mxu0 0.0
    %718 = vmatpush1.msra.mxu0 0.0
    %719 = vmatprep.subr.mxu0 0.0
    %720 = vmatpush1.msra.mxu0 0.0
    %721 = vmatprep.subr.mxu0 0.0
    %722 = vmatpush1.msra.mxu0 0.0
    %723 = vmatprep.subr.mxu0 0.0
    %724 = vmatpush1.msra.mxu0 0.0
    %725 = vmatprep.subr.mxu0 0.0
    %726 = vmatpush1.msra.mxu0 0.0
    %727 = vmatprep.subr.mxu0 0.0
    %728 = vmatpush1.msra.mxu0 0.0
    %729 = vmatprep.subr.mxu0 0.0
    %730 = vmatpush1.msra.mxu0 0.0
    %731 = vmatprep.subr.mxu0 0.0
    %732 = vmatpush1.msra.mxu0 0.0
    %733 = vmatprep.subr.mxu0 0.0
    %734 = vmatpush1.msra.mxu0 0.0
    %735 = vmatprep.subr.mxu0 0.0
    %736 = vmatpush1.msra.mxu0 0.0
    %737 = vmatprep.subr.mxu0 0.0
    %738 = vmatpush1.msra.mxu0 0.0
    %739 = vmatprep.subr.mxu0 0.0
    %740 = vmatpush1.msra.mxu0 0.0
    %741 = vmatprep.subr.mxu0 0.0
    %742 = vmatpush1.msra.mxu0 0.0
    %743 = vmatprep.subr.mxu0 0.0
    %744 = vmatpush1.msra.mxu0 0.0
    %745 = vmatprep.subr.mxu0 0.0
    %746 = vmatpush1.msra.mxu0 0.0
    %747 = vmatprep.subr.mxu0 0.0
    %748 = vmatpush1.msra.mxu0 0.0
    %749 = vmatprep.subr.mxu0 0.0
    %750 = vmatpush1.msra.mxu0 0.0
    %751 = vmatprep.subr.mxu0 0.0
    %752 = vmatpush1.msra.mxu0 0.0
    %753 = vmatprep.subr.mxu0 0.0
    %754 = vmatpush1.msra.mxu0 0.0
    %755 = vmatprep.mubr.f32.mxu0 0.0
    %v756 = vand.u32 %v511, 4294901760
    %v757 = vsub.f32 %v511, %v756
    %758 = vmatmul.mubr.f32.gmra.mrb[0].mxu0 %v757
    %v759 = vpop.f32.mrb[0].mxu0
    %v760 = vadd.f32 %v680, %v759
    %v761 = vpop.f32.mrb[0].mxu0
    %762 = vdwg.mxu0
    %763 = vmatprep.subr.mxu0 0.0
    %v764 = vand.u32 %v498, 4294901760
    %765 = vmatpush1.msra.mxu0 %v764
    %766 = vmatprep.subr.mxu0 0.0
    %v767 = vand.u32 %v499, 4294901760
    %768 = vmatpush1.msra.mxu0 %v767
    %769 = vmatprep.subr.mxu0 0.0
    %v770 = vand.u32 %v500, 4294901760
    %771 = vmatpush1.msra.mxu0 %v770
    %772 = vmatprep.subr.mxu0 0.0
    %v773 = vand.u32 %v501, 4294901760
    %774 = vmatpush1.msra.mxu0 %v773
    %775 = vmatprep.subr.mxu0 0.0
    %776 = vmatpush1.msra.mxu0 0.0
    %777 = vmatprep.subr.mxu0 0.0
    %778 = vmatpush1.msra.mxu0 0.0
    %779 = vmatprep.subr.mxu0 0.0
    %780 = vmatpush1.msra.mxu0 0.0
    %781 = vmatprep.subr.mxu0 0.0
    %782 = vmatpush1.msra.mxu0 0.0
    %783 = vmatprep.subr.mxu0 0.0
    %784 = vmatpush1.msra.mxu0 0.0
    %785 = vmatprep.subr.mxu0 0.0
    %786 = vmatpush1.msra.mxu0 0.0
    %787 = vmatprep.subr.mxu0 0.0
    %788 = vmatpush1.msra.mxu0 0.0
    %789 = vmatprep.subr.mxu0 0.0
    %790 = vmatpush1.msra.mxu0 0.0
    %791 = vmatprep.subr.mxu0 0.0
    %792 = vmatpush1.msra.mxu0 0.0
    %793 = vmatprep.subr.mxu0 0.0
    %794 = vmatpush1.msra.mxu0 0.0
    %795 = vmatprep.subr.mxu0 0.0
    %796 = vmatpush1.msra.mxu0 0.0
    %797 = vmatprep.subr.mxu0 0.0
    %798 = vmatpush1.msra.mxu0 0.0
    %799 = vmatprep.subr.mxu0 0.0
    %800 = vmatpush1.msra.mxu0 0.0
    %801 = vmatprep.subr.mxu0 0.0
    %802 = vmatpush1.msra.mxu0 0.0
    %803 = vmatprep.subr.mxu0 0.0
    %804 = vmatpush1.msra.mxu0 0.0
    %805 = vmatprep.subr.mxu0 0.0
    %806 = vmatpush1.msra.mxu0 0.0
    %807 = vmatprep.subr.mxu0 0.0
    %808 = vmatpush1.msra.mxu0 0.0
    %809 = vmatprep.subr.mxu0 0.0
    %810 = vmatpush1.msra.mxu0 0.0
    %811 = vmatprep.subr.mxu0 0.0
    %812 = vmatpush1.msra.mxu0 0.0
    %813 = vmatprep.subr.mxu0 0.0
    %814 = vmatpush1.msra.mxu0 0.0
    %815 = vmatprep.subr.mxu0 0.0
    %816 = vmatpush1.msra.mxu0 0.0
    %817 = vmatprep.subr.mxu0 0.0
    %818 = vmatpush1.msra.mxu0 0.0
    %819 = vmatprep.subr.mxu0 0.0
    %820 = vmatpush1.msra.mxu0 0.0
    %821 = vmatprep.subr.mxu0 0.0
    %822 = vmatpush1.msra.mxu0 0.0
    %823 = vmatprep.subr.mxu0 0.0
    %824 = vmatpush1.msra.mxu0 0.0
    %825 = vmatprep.subr.mxu0 0.0
    %826 = vmatpush1.msra.mxu0 0.0
    %827 = vmatprep.subr.mxu0 0.0
    %828 = vmatpush1.msra.mxu0 0.0
    %829 = vmatprep.subr.mxu0 0.0
    %830 = vmatpush1.msra.mxu0 0.0
    %831 = vmatprep.mubr.f32.mxu0 0.0
    %v832 = vand.u32 %v511, 4294901760
    %v833 = vsub.f32 %v511, %v832
    %v834 = vand.u32 %v833, 4294901760
    %835 = vmatmul.mubr.f32.gmra.mrb[0].mxu0 %v834
    %v836 = vpop.f32.mrb[0].mxu0
    %v837 = vadd.f32 %v760, %v836
    %v838 = vpop.f32.mrb[0].mxu0
    %839 = vdwg.mxu0
    %840 = vmatprep.subr.mxu0 0.0
    %v841 = vand.u32 %v498, 4294901760
    %v842 = vsub.f32 %v498, %v841
    %v843 = vand.u32 %v842, 4294901760
    %844 = vmatpush1.msra.mxu0 %v843
    %845 = vmatprep.subr.mxu0 0.0
    %v846 = vand.u32 %v499, 4294901760
    %v847 = vsub.f32 %v499, %v846
    %v848 = vand.u32 %v847, 4294901760
    %849 = vmatpush1.msra.mxu0 %v848
    %850 = vmatprep.subr.mxu0 0.0
    %v851 = vand.u32 %v500, 4294901760
    %v852 = vsub.f32 %v500, %v851
    %v853 = vand.u32 %v852, 4294901760
    %854 = vmatpush1.msra.mxu0 %v853
    %855 = vmatprep.subr.mxu0 0.0
    %v856 = vand.u32 %v501, 4294901760
    %v857 = vsub.f32 %v501, %v856
    %v858 = vand.u32 %v857, 4294901760
    %859 = vmatpush1.msra.mxu0 %v858
    %860 = vmatprep.subr.mxu0 0.0
    %861 = vmatpush1.msra.mxu0 0.0
    %862 = vmatprep.subr.mxu0 0.0
    %863 = vmatpush1.msra.mxu0 0.0
    %864 = vmatprep.subr.mxu0 0.0
    %865 = vmatpush1.msra.mxu0 0.0
    %866 = vmatprep.subr.mxu0 0.0
    %867 = vmatpush1.msra.mxu0 0.0
    %868 = vmatprep.subr.mxu0 0.0
    %869 = vmatpush1.msra.mxu0 0.0
    %870 = vmatprep.subr.mxu0 0.0
    %871 = vmatpush1.msra.mxu0 0.0
    %872 = vmatprep.subr.mxu0 0.0
    %873 = vmatpush1.msra.mxu0 0.0
    %874 = vmatprep.subr.mxu0 0.0
    %875 = vmatpush1.msra.mxu0 0.0
    %876 = vmatprep.subr.mxu0 0.0
    %877 = vmatpush1.msra.mxu0 0.0
    %878 = vmatprep.subr.mxu0 0.0
    %879 = vmatpush1.msra.mxu0 0.0
    %880 = vmatprep.subr.mxu0 0.0
    %881 = vmatpush1.msra.mxu0 0.0
    %882 = vmatprep.subr.mxu0 0.0
    %883 = vmatpush1.msra.mxu0 0.0
    %884 = vmatprep.subr.mxu0 0.0
    %885 = vmatpush1.msra.mxu0 0.0
    %886 = vmatprep.subr.mxu0 0.0
    %887 = vmatpush1.msra.mxu0 0.0
    %888 = vmatprep.subr.mxu0 0.0
    %889 = vmatpush1.msra.mxu0 0.0
    %890 = vmatprep.subr.mxu0 0.0
    %891 = vmatpush1.msra.mxu0 0.0
    %892 = vmatprep.subr.mxu0 0.0
    %893 = vmatpush1.msra.mxu0 0.0
    %894 = vmatprep.subr.mxu0 0.0
    %895 = vmatpush1.msra.mxu0 0.0
    %896 = vmatprep.subr.mxu0 0.0
    %897 = vmatpush1.msra.mxu0 0.0
    %898 = vmatprep.subr.mxu0 0.0
    %899 = vmatpush1.msra.mxu0 0.0
    %900 = vmatprep.subr.mxu0 0.0
    %901 = vmatpush1.msra.mxu0 0.0
    %902 = vmatprep.subr.mxu0 0.0
    %903 = vmatpush1.msra.mxu0 0.0
    %904 = vmatprep.subr.mxu0 0.0
    %905 = vmatpush1.msra.mxu0 0.0
    %906 = vmatprep.subr.mxu0 0.0
    %907 = vmatpush1.msra.mxu0 0.0
    %908 = vmatprep.subr.mxu0 0.0
    %909 = vmatpush1.msra.mxu0 0.0
    %910 = vmatprep.subr.mxu0 0.0
    %911 = vmatpush1.msra.mxu0 0.0
    %912 = vmatprep.subr.mxu0 0.0
    %913 = vmatpush1.msra.mxu0 0.0
    %914 = vmatprep.subr.mxu0 0.0
    %915 = vmatpush1.msra.mxu0 0.0
    %916 = vmatprep.mubr.f32.mxu0 0.0
    %v917 = vand.u32 %v511, 4294901760
    %918 = vmatmul.mubr.f32.gmra.mrb[0].mxu0 %v917
    %v919 = vpop.f32.mrb[0].mxu0
    %v920 = vadd.f32 %v837, %v919
    %v921 = vpop.f32.mrb[0].mxu0
    %922 = vdwg.mxu0
    %923 = vmatprep.subr.mxu0 0.0
    %v924 = vand.u32 %v498, 4294901760
    %925 = vmatpush1.msra.mxu0 %v924
    %926 = vmatprep.subr.mxu0 0.0
    %v927 = vand.u32 %v499, 4294901760
    %928 = vmatpush1.msra.mxu0 %v927
    %929 = vmatprep.subr.mxu0 0.0
    %v930 = vand.u32 %v500, 4294901760
    %931 = vmatpush1.msra.mxu0 %v930
    %932 = vmatprep.subr.mxu0 0.0
    %v933 = vand.u32 %v501, 4294901760
    %934 = vmatpush1.msra.mxu0 %v933
    %935 = vmatprep.subr.mxu0 0.0
    %936 = vmatpush1.msra.mxu0 0.0
    %937 = vmatprep.subr.mxu0 0.0
    %938 = vmatpush1.msra.mxu0 0.0
    %939 = vmatprep.subr.mxu0 0.0
    %940 = vmatpush1.msra.mxu0 0.0
    %941 = vmatprep.subr.mxu0 0.0
    %942 = vmatpush1.msra.mxu0 0.0
    %943 = vmatprep.subr.mxu0 0.0
    %944 = vmatpush1.msra.mxu0 0.0
    %945 = vmatprep.subr.mxu0 0.0
    %946 = vmatpush1.msra.mxu0 0.0
    %947 = vmatprep.subr.mxu0 0.0
    %948 = vmatpush1.msra.mxu0 0.0
    %949 = vmatprep.subr.mxu0 0.0
    %950 = vmatpush1.msra.mxu0 0.0
    %951 = vmatprep.subr.mxu0 0.0
    %952 = vmatpush1.msra.mxu0 0.0
    %953 = vmatprep.subr.mxu0 0.0
    %954 = vmatpush1.msra.mxu0 0.0
    %955 = vmatprep.subr.mxu0 0.0
    %956 = vmatpush1.msra.mxu0 0.0
    %957 = vmatprep.subr.mxu0 0.0
    %958 = vmatpush1.msra.mxu0 0.0
    %959 = vmatprep.subr.mxu0 0.0
    %960 = vmatpush1.msra.mxu0 0.0
    %961 = vmatprep.subr.mxu0 0.0
    %962 = vmatpush1.msra.mxu0 0.0
    %963 = vmatprep.subr.mxu0 0.0
    %964 = vmatpush1.msra.mxu0 0.0
    %965 = vmatprep.subr.mxu0 0.0
    %966 = vmatpush1.msra.mxu0 0.0
    %967 = vmatprep.subr.mxu0 0.0
    %968 = vmatpush1.msra.mxu0 0.0
    %969 = vmatprep.subr.mxu0 0.0
    %970 = vmatpush1.msra.mxu0 0.0
    %971 = vmatprep.subr.mxu0 0.0
    %972 = vmatpush1.msra.mxu0 0.0
    %973 = vmatprep.subr.mxu0 0.0
    %974 = vmatpush1.msra.mxu0 0.0
    %975 = vmatprep.subr.mxu0 0.0
    %976 = vmatpush1.msra.mxu0 0.0
    %977 = vmatprep.subr.mxu0 0.0
    %978 = vmatpush1.msra.mxu0 0.0
    %979 = vmatprep.subr.mxu0 0.0
    %980 = vmatpush1.msra.mxu0 0.0
    %981 = vmatprep.subr.mxu0 0.0
    %982 = vmatpush1.msra.mxu0 0.0
    %983 = vmatprep.subr.mxu0 0.0
    %984 = vmatpush1.msra.mxu0 0.0
    %985 = vmatprep.subr.mxu0 0.0
    %986 = vmatpush1.msra.mxu0 0.0
    %987 = vmatprep.subr.mxu0 0.0
    %988 = vmatpush1.msra.mxu0 0.0
    %989 = vmatprep.subr.mxu0 0.0
    %990 = vmatpush1.msra.mxu0 0.0
    %991 = vmatprep.mubr.f32.mxu0 0.0
    %v992 = vand.u32 %v511, 4294901760
    %993 = vmatmul.mubr.f32.gmra.mrb[0].mxu0 %v992
    %v994 = vpop.f32.mrb[0].mxu0
    %v995 = vadd.f32 %v920, %v994
    %v996 = vpop.f32.mrb[0].mxu0
    %997 = vdwg.mxu0
    %vm998 = vcmask 58368
    %v999 = vsel %vm998, %v995, -inf
    %1000 = vmax.xlane.f32.xlu0 %v999
    %v1001 = vpop.xlane.xlu0 %1000
    %v1002 = vsub.f32 %v995, %v1001
    %v1003 = vmul.f32 %v1002, 1.442695
    %v1004 = vpow.pop %v1003
    %v1005 = vsel %vm998, %v1004, 0.0
    %1006 = vadd.xlane.f32.xlu0 %v1005
    %v1007 = vpop.xlane.xlu0 %1006
    %v1008 = vlog2.pop %v1007
    %v1009 = vmul.f32 %v1008, 0.6931472
    %v1010 = vsub.f32 %v1002, %v1009
    %v1011 = vld [vmem:[%s1] sm:$0x3]
    %v1012 = vadd.f32 %v995, %v1011
    %v1013 = vsel %vm998, %v1012, -inf
    %1014 = vmax.xlane.f32.xlu0 %v1013
    %v1015 = vpop.xlane.xlu0 %1014
    %v1016 = vlaneseq
    %v1017 = vand.u32 %v1016, 127
    %vm1018 = vcmp.ge.f32.partialorder %v1012, %v1015
    %v1019 = vsel %vm1018, %v1017, 8
    %v1020 = vsel %vm998, %v1019, 2147483647
    %v1021 = vand.u32 %v1020, 65535
    %v1022 = vshra.s32 %v1020, 16
    %v1023 = vcvt.s32.f32 %v1021
    %v1024 = vcvt.s32.f32 %v1022
    %1025 = vmin.xlane.f32.xlu0 %v1024
    %v1026 = vpop.xlane.xlu0 %1025
    %vm1027 = vcmp.eq.f32.partialorder %v1024, %v1026
    %v1028 = vsel %vm1027, %v1023, inf
    %1029 = vmin.xlane.f32.xlu0 %v1028
    %v1030 = vpop.xlane.xlu0 %1029
    %v1031 = vcvt.f32.s32 %v1030
    %v1032 = vcvt.f32.s32 %v1026
    %v1033 = vshll.u32 %v1032, 16
    %v1034 = vadd.s32 %v1033, %v1031
    %vm1035 = vcmp.eq.s32.totalorder %v1017, %v1034
    %v1036 = vsel %vm1035, %v1010, 0.0
    %v1037 = vsel %vm998, %v1036, 0.0
    %1038 = vadd.xlane.f32.xlu0 %v1037
    %v1039 = vpop.xlane.xlu0 %1038
    %vm1040 = vcmp.eq.s32.totalorder %v1017, 0
    %v1041 = vcvt.s32.f32 %v1034
    %vm1042 = vcmp.eq.s32.totalorder %v1017, 1
    %vm1043 = vcmp.eq.s32.totalorder %v1017, 2
    %1045 = vset.pattern.permute.xlu0 8
    %1046 = vperm.xlu0 %1045, %v995
    %v1047 = vpop.permute.xlu0 %1046
    %v1049 = vsel %vm1043, %v1047, 0.0
    %v1050 = vsel %vm1042, %v1039, %v1049
    %v1051 = vsel %vm1040, %v1041, %v1050
    %1052 = vst.msk [vmem:[#allocation2] sm:$0x3] %vm998, %v1051
    // Predicated region
    $region26: #{tpu_custom_call.1} parent=1 // pred_check
      _
    $region27: #{tpu_custom_call.1} parent=1 // pred_check_branch
      %1054 = sbr.rel (0) target = $region29
    $region28: #{tpu_custom_call.1} parent=1 // pred_region
      %s1056 = ssub.s32 32, 32
      %1057 = vsyncadd [#allocation3], %s1056
      %s1059 = sshll.u32 [#allocation2], 4
      %s1060 = int_to_ptr.vmem [resolvable:$true] %s1059
      %1062 = dma.vmem_to_hbm [thread:$0]  %s1060, 32, %s6, [#allocation3]
    $region29: #{tpu_custom_call.1} parent=1 // pred_fallthru
      _
    // Predicated region
    $region30: #{tpu_custom_call.1} parent=1 // pred_check
      _
    $region31: #{tpu_custom_call.1} parent=1 // pred_check_branch
      %1064 = sbr.rel (0) target = $region33
    $region32: #{tpu_custom_call.1} parent=1 // pred_region
      %1065 = dma.done [#allocation3], 32
    $region33: #{tpu_custom_call.1} parent=1 // pred_fallthru
      _
    %1066 = vsyncpa [#allocation3], 1

</llo_original>
